<compile_context>
chip_gen: v6e
topology: v6e:2x2x1
jax: 0.10.0
libtpu: 0.0.40
codegen_flags: <defaults>
</compile_context>

<pallas_src>
import jax
import jax.numpy as jnp
from jax.experimental import pallas as pl
from jax.experimental.pallas import tpu as pltpu


def conv_embed_kernel(patches_ref, w_ref, b_ref, out_ref):
    # patches: (P, tile_n)  w: (tile_d, P)  b: (tile_d, 1)  out: (tile_d, tile_n)
    acc = jnp.dot(w_ref[...], patches_ref[...],
                  preferred_element_type=jnp.float32)
    out_ref[...] = (acc + b_ref[...]).astype(out_ref.dtype)


def _pick_tile(dim, max_tile, align):
    """Largest divisor of `dim` that is a multiple of `align` and <= max_tile;
    falls back to the full dimension (block == full dim is always legal)."""
    if dim <= max_tile:
        return dim
    t = (max_tile // align) * align
    while t >= align:
        if dim % t == 0:
            return t
        t -= align
    return dim


def embedding_forward(x, weight, bias, P=8, S=4):
    """x: (B, M, L) f32.  weight: (D, 1, P).  bias: (D,).  Returns (B, M, D, N)."""
    B, M, L = x.shape
    D = weight.shape[0]
    N = L // S  # = (L + (P - S) - P) // S + 1, same as the PyTorch module

    # ---- glue: replicate pad + im2col (pure indexing; tiny vs. the output) ----
    xf = x.reshape(B * M, L)
    x_pad = jnp.pad(xf, ((0, 0), (0, P - S)), mode="edge")        # (BM, L + P - S)
    # Gather indices shaped (P, N) so patches come out as (BM, P, N):
    # P on the sublane axis (one f32 tile), N lane-dense.
    idx = jnp.arange(P)[:, None] + jnp.arange(N)[None, :] * S
    patches = x_pad[:, idx].reshape(B, M, P, N)                   # (B, M, P, N)

    w = weight[:, 0, :]                                           # (D, P)
    b = bias.reshape(D, 1)                                        # (D, 1)

    tile_d = _pick_tile(D, 512, 8)
    tile_n = _pick_tile(N, 512, 128)
    grid = (B, M, D // tile_d, N // tile_n)

    out = pl.pallas_call(
        conv_embed_kernel,
        out_shape=jax.ShapeDtypeStruct((B, M, D, N), x.dtype),
        grid_spec=pltpu.PrefetchScalarGridSpec(
            num_scalar_prefetch=0,
            grid=grid,
            in_specs=[
                # patches block: (P, tile_n); leading size-1 dims squeezed.
                pl.BlockSpec((None, None, P, tile_n),
                             lambda bi, mi, di, ni: (bi, mi, 0, ni)),
                # weight tile: (tile_d, P) -- only depends on di, so it is not
                # re-fetched across the inner ni steps.
                pl.BlockSpec((tile_d, P),
                             lambda bi, mi, di, ni: (di, 0)),
                # bias tile: (tile_d, 1)
                pl.BlockSpec((tile_d, 1),
                             lambda bi, mi, di, ni: (di, 0)),
            ],
            # Output written directly in (B, M, D, N) layout, N on lanes.
            out_specs=pl.BlockSpec((None, None, tile_d, tile_n),
                                   lambda bi, mi, di, ni: (bi, mi, di, ni)),
        ),
        compiler_params=pltpu.CompilerParams(
            dimension_semantics=("parallel", "parallel", "parallel", "parallel")),
    )(patches, w, b)

    return out


if __name__ == "__main__":
    # Small but representative shapes for the module's forward:
    # N = L // S = 128 keeps the lane axis dense; D = 256 keeps the run quick.
    B, M, L = 2, 4, 512
    P, S, D = 8, 4, 256

    key = jax.random.PRNGKey(0)
    kx, kw, kb = jax.random.split(key, 3)

    x = jax.random.normal(kx, (B, M, L), dtype=jnp.float32)

    # Deterministic Conv1d-style init: U(-sqrt(k), sqrt(k)), k = 1 / (in_ch * P)
    bound = 1.0 / (1 * P) ** 0.5
    weight = jax.random.uniform(kw, (D, 1, P), minval=-bound, maxval=bound,
                                dtype=jnp.float32)
    bias = jax.random.uniform(kb, (D,), minval=-bound, maxval=bound,
                              dtype=jnp.float32)

    fwd = jax.jit(embedding_forward, static_argnames=("P", "S"))
    out = fwd(x, weight, bias, P=P, S=S)
    out = jax.block_until_ready(out)

    # Reference (plain JAX) matching PyTorch Conv1d + replicate-pad semantics.
    xf = x.reshape(B * M, L)
    x_pad = jnp.pad(xf, ((0, 0), (0, P - S)), mode="edge")
    N = L // S
    ridx = jnp.arange(N)[:, None] * S + jnp.arange(P)[None, :]
    patches_ref = x_pad[:, ridx]                                  # (BM, N, P)
    ref = jnp.einsum("rnp,dp->rdn", patches_ref, weight[:, 0, :]) \
        + bias[None, :, None]
    ref = ref.reshape(B, M, D, N)

    assert out.shape == (B, M, D, N), out.shape
    assert jnp.allclose(out, ref, atol=1e-5, rtol=1e-5)
    print("KERNEL_OK")
</pallas_src>

<mosaic_0001>
module attributes {stable_mosaic.version = 11 : i64} {
  func.func @conv_embed_kernel(%arg0: i32, %arg1: i32, %arg2: i32, %arg3: i32, %arg4: memref<1x1x8x128xf32, #tpu.memory_space<vmem>>, %arg5: memref<256x8xf32, #tpu.memory_space<vmem>>, %arg6: memref<256x1xf32, #tpu.memory_space<vmem>>, %arg7: memref<1x1x256x128xf32, #tpu.memory_space<vmem>>) attributes {dimension_semantics = [#tpu.dimension_semantics<parallel>, #tpu.dimension_semantics<parallel>, #tpu.dimension_semantics<parallel>, #tpu.dimension_semantics<parallel>], iteration_bounds = array<i64: 2, 4, 1, 1>, scalar_prefetch = 0 : i64, scratch_operands = 0 : i64, tpu.core_type = #tpu.core_type<tc>, window_params = [{transform_indices = @transform_0, window_bounds = array<i64: 1, 1, 8, 128>}, {transform_indices = @transform_1, window_bounds = array<i64: 256, 8>}, {transform_indices = @transform_2, window_bounds = array<i64: 256, 1>}, {transform_indices = @transform_3, window_bounds = array<i64: 1, 1, 256, 128>}]} {
    %c0 = arith.constant 0 : index
    %c0_0 = arith.constant 0 : index
    %0 = vector.load %arg5[%c0, %c0_0] : memref<256x8xf32, #tpu.memory_space<vmem>>, vector<256x8xf32>
    %c0_1 = arith.constant 0 : index
    %c0_2 = arith.constant 0 : index
    %c0_3 = arith.constant 0 : index
    %c0_4 = arith.constant 0 : index
    %1 = vector.load %arg4[%c0_1, %c0_2, %c0_3, %c0_4] : memref<1x1x8x128xf32, #tpu.memory_space<vmem>>, vector<1x1x8x128xf32>
    %2 = vector.shape_cast %1 : vector<1x1x8x128xf32> to vector<8x128xf32>
    %cst = arith.constant dense<0.000000e+00> : vector<256x128xf32>
    %3 = tpu.matmul %0, %2, %cst {dimension_numbers = #tpu.dot_dimension_numbers<[1], [0], [0], [1], [0, 0, 1, 1], [], []>} : vector<256x8xf32>, vector<8x128xf32>, vector<256x128xf32> -> vector<256x128xf32>
    %c0_5 = arith.constant 0 : index
    %c0_6 = arith.constant 0 : index
    %4 = vector.load %arg6[%c0_5, %c0_6] : memref<256x1xf32, #tpu.memory_space<vmem>>, vector<256x1xf32>
    %5 = vector.broadcast %4 : vector<256x1xf32> to vector<256x128xf32>
    %6 = arith.addf %3, %5 : vector<256x128xf32>
    %c0_7 = arith.constant 0 : index
    %c0_8 = arith.constant 0 : index
    %c0_9 = arith.constant 0 : index
    %c0_10 = arith.constant 0 : index
    %7 = vector.load %arg7[%c0_7, %c0_8, %c0_9, %c0_10] : memref<1x1x256x128xf32, #tpu.memory_space<vmem>>, vector<1x1x256x128xf32>
    %8 = vector.shape_cast %7 : vector<1x1x256x128xf32> to vector<256x128xf32>
    %9 = vector.shape_cast %6 : vector<256x128xf32> to vector<1x1x256x128xf32>
    tpu.vector_store %arg7[%c0_7, %c0_8, %c0_9, %c0_10], %9 {strides = array<i32>} : memref<1x1x256x128xf32, #tpu.memory_space<vmem>>, vector<1x1x256x128xf32>,
    return
  }
  func.func @transform_0(%arg0: i32, %arg1: i32, %arg2: i32, %arg3: i32) -> (i32, i32, i32, i32) {
    %c0_i32 = arith.constant 0 : i32
    %c0_i32_0 = arith.constant 0 : i32
    return %arg0, %arg1, %c0_i32, %arg3 : i32, i32, i32, i32
  }
  func.func @transform_1(%arg0: i32, %arg1: i32, %arg2: i32, %arg3: i32) -> (i32, i32) {
    %c0_i32 = arith.constant 0 : i32
    %c0_i32_0 = arith.constant 0 : i32
    return %arg2, %c0_i32 : i32, i32
  }
  func.func @transform_2(%arg0: i32, %arg1: i32, %arg2: i32, %arg3: i32) -> (i32, i32) {
    %c0_i32 = arith.constant 0 : i32
    %c0_i32_0 = arith.constant 0 : i32
    return %arg2, %c0_i32 : i32, i32
  }
  func.func @transform_3(%arg0: i32, %arg1: i32, %arg2: i32, %arg3: i32) -> (i32, i32, i32, i32) {
    %c0_i32 = arith.constant 0 : i32
    return %arg0, %arg1, %arg2, %arg3 : i32, i32, i32, i32
  }
}

</mosaic_0001>

<llo_original>
// kernel: embedding_forward.1
$region0: #{embedding_forward.1}
  #allocation0 [shape = 'u32[]', space=smem, size = 0x4, offset = 0x4, fixed_abs, tag = 'smem constant byte address 0x4 - core index']
  #allocation1 [shape = 'u32[144,128]{1,0:T(1,128)}', space=vmem, size = 0x12000, scoped, tag = 'internal scratch']
  %s0 = inlined_call_operand.vmem [shape: f32[2,4,8,128], index: 0, kind: input, shape index: {}]
  %s1 = inlined_call_operand.vmem [shape: f32[256,8], index: 1, kind: input, shape index: {}]
  %s2 = inlined_call_operand.vmem [shape: f32[256,1], index: 2, kind: input, shape index: {}]
  %s3 = inlined_call_operand.hbm [shape: f32[2,4,256,128], index: 3, kind: output, shape index: {}]
  %s4 = sld [smem:[#allocation0]]
  $region45: #{embedding_forward.1} parent=0
    _
  %s6 = ssub.s32 1, %s4
  %s7 = scalar_select 0, %s6, %s4
  $region1: #{embedding_forward.1} parent=0
    #allocation2 [shape = 'u8[262144]{0}', space=vmem, size = 0x40000, scoped, tag = 'output window, operand 0']
    #allocation3 [shape = 's32[2]{0}', space=sflag, size = 0x8, scoped, tag = 'scoped memory for embedding_forward.1']
    %8 = vsyncpa [#allocation3], 0
    %s9 = scalar_lea.sflag [#allocation3], 1
    %10 = vsyncpa %s9, 0
    loop: start=0, step=1, limit=10
    $region2: #{embedding_forward.1} parent=1 // loop_pre_header
      _
    $region3: #{embedding_forward.1} parent=1 // loop_header
      %s12 = sphi 0, %s16
      %p13 = scmp.ge.s32.totalorder %s12, 10
      %s19 = sphi 0, %s45
      %s20 = sphi 0, %s41
      %s21 = sphi 0, %s37
      %s22 = sphi 0, %s33
      %s23 = sphi 0, %s19
      %s24 = sphi 0, %s20
      %s25 = sphi 0, %s21
      %s26 = sphi 0, %s22
      %s27 = sphi 0, %s23
      %s28 = sphi 0, %s24
      %s29 = sphi 0, %s25
      %s30 = sphi 0, %s26
      %s52 = sphi 0, %s54
      %s55 = sphi 0, %s52
      %s56 = sphi 0, %s55
      %s72 = sphi 0, %s56
      %s78 = sphi 0, %s80
      %s81 = sphi 0, %s78
      %s82 = sphi 0, %s81
      %s98 = sphi 0, %s82
      %s104 = sphi 0, %s106
      %s107 = sphi 0, %s104
      %s108 = sphi 0, %s107
      %s124 = sphi 0, %s108
      %s136 = sphi 0, %s138
      %s139 = sphi 0, %s136
      %s140 = sphi 0, %s139
      %s156 = sphi 0, %s140
    $region4: #{embedding_forward.1} parent=1 // loop_header_branch
      %15 = sbr.rel (%p13) target = $region8
    $region5: #{embedding_forward.1} parent=1 // loop_body
      %s17 = ssub.s32 %s12, 1
      %s18 = ssub.s32 %s12, 2
      %s31 = sadd.s32 1, %s22
      %p32 = scmp.ge.s32.totalorder %s31, 1
      %s33 = scalar_select %p32, 0, %s31
      %s34 = sadd.s32 1, %s21
      %s35 = scalar_select %p32, %s34, %s21
      %p36 = scmp.ge.s32.totalorder %s35, 1
      %s37 = scalar_select %p36, 0, %s35
      %s38 = sadd.s32 1, %s20
      %s39 = scalar_select %p36, %s38, %s20
      %p40 = scmp.ge.s32.totalorder %s39, 4
      %s41 = scalar_select %p40, 0, %s39
      %s42 = sadd.s32 1, %s19
      %s43 = scalar_select %p40, %s42, %s19
      %p44 = scmp.ge.s32.totalorder %s43, 2
      %s45 = scalar_select %p44, 0, %s43
      %s46 = ssub.s32 %s19, %s45
      %s47 = ssub.s32 %s20, %s41
      %s48 = sor.u32 %s46, %s47
      %s49 = ssub.s32 %s22, %s33
      %s50 = sor.u32 %s48, %s49
      %p51 = scmp.eq.s32.totalorder %s50, 0
      %s53 = sadd.s32 %s52, 1
      %s54 = scalar_select %p51, %s52, %s53
      %p57 = pneg %p51
      %p58 = scmp.eq.s32.totalorder %s12, 7
      %p59 = por %p57, %p58
      %p60 = scmp.ne.s32.totalorder %s52, %s55
      %p61 = scmp.eq.s32.totalorder %s12, 0
      %p62 = por %p60, %p61
      %p63 = scmp.ne.s32.totalorder %s52, %s55
      %p64 = scmp.eq.s32.totalorder %s17, 7
      %p65 = por %p63, %p64
      %p66 = scmp.ne.s32.totalorder %s55, %s56
      %p67 = scmp.eq.s32.totalorder %s17, 0
      %p68 = por %p66, %p67
      %p69 = scmp.ne.s32.totalorder %s55, %s56
      %p70 = scmp.eq.s32.totalorder %s18, 7
      %p71 = por %p69, %p70
      %p73 = scmp.ne.s32.totalorder %s56, %s72
      %p74 = scmp.eq.s32.totalorder %s18, 0
      %p75 = por %p73, %p74
      %s76 = ssub.s32 %s21, %s37
      %p77 = scmp.eq.s32.totalorder %s76, 0
      %s79 = sadd.s32 %s78, 1
      %s80 = scalar_select %p77, %s78, %s79
      %p83 = pneg %p77
      %p84 = scmp.eq.s32.totalorder %s12, 7
      %p85 = por %p83, %p84
      %p86 = scmp.ne.s32.totalorder %s78, %s81
      %p87 = scmp.eq.s32.totalorder %s12, 0
      %p88 = por %p86, %p87
      %p89 = scmp.ne.s32.totalorder %s78, %s81
      %p90 = scmp.eq.s32.totalorder %s17, 7
      %p91 = por %p89, %p90
      %p92 = scmp.ne.s32.totalorder %s81, %s82
      %p93 = scmp.eq.s32.totalorder %s17, 0
      %p94 = por %p92, %p93
      %p95 = scmp.ne.s32.totalorder %s81, %s82
      %p96 = scmp.eq.s32.totalorder %s18, 7
      %p97 = por %p95, %p96
      %p99 = scmp.ne.s32.totalorder %s82, %s98
      %p100 = scmp.eq.s32.totalorder %s18, 0
      %p101 = por %p99, %p100
      %s102 = ssub.s32 %s21, %s37
      %p103 = scmp.eq.s32.totalorder %s102, 0
      %s105 = sadd.s32 %s104, 1
      %s106 = scalar_select %p103, %s104, %s105
      %p109 = pneg %p103
      %p110 = scmp.eq.s32.totalorder %s12, 7
      %p111 = por %p109, %p110
      %p112 = scmp.ne.s32.totalorder %s104, %s107
      %p113 = scmp.eq.s32.totalorder %s12, 0
      %p114 = por %p112, %p113
      %p115 = scmp.ne.s32.totalorder %s104, %s107
      %p116 = scmp.eq.s32.totalorder %s17, 7
      %p117 = por %p115, %p116
      %p118 = scmp.ne.s32.totalorder %s107, %s108
      %p119 = scmp.eq.s32.totalorder %s17, 0
      %p120 = por %p118, %p119
      %p121 = scmp.ne.s32.totalorder %s107, %s108
      %p122 = scmp.eq.s32.totalorder %s18, 7
      %p123 = por %p121, %p122
      %p125 = scmp.ne.s32.totalorder %s108, %s124
      %p126 = scmp.eq.s32.totalorder %s18, 0
      %p127 = por %p125, %p126
      %s128 = ssub.s32 %s19, %s45
      %s129 = ssub.s32 %s20, %s41
      %s130 = sor.u32 %s128, %s129
      %s131 = ssub.s32 %s21, %s37
      %s132 = sor.u32 %s130, %s131
      %s133 = ssub.s32 %s22, %s33
      %s134 = sor.u32 %s132, %s133
      %p135 = scmp.eq.s32.totalorder %s134, 0
      %s137 = sadd.s32 %s136, 1
      %s138 = scalar_select %p135, %s136, %s137
      %p141 = pneg %p135
      %p142 = scmp.eq.s32.totalorder %s12, 7
      %p143 = por %p141, %p142
      %p144 = scmp.ne.s32.totalorder %s136, %s139
      %p145 = scmp.eq.s32.totalorder %s12, 0
      %p146 = por %p144, %p145
      %p147 = scmp.ne.s32.totalorder %s136, %s139
      %p148 = scmp.eq.s32.totalorder %s17, 7
      %p149 = por %p147, %p148
      %p150 = scmp.ne.s32.totalorder %s139, %s140
      %p151 = scmp.eq.s32.totalorder %s17, 0
      %p152 = por %p150, %p151
      %p153 = scmp.ne.s32.totalorder %s139, %s140
      %p154 = scmp.eq.s32.totalorder %s18, 7
      %p155 = por %p153, %p154
      %p157 = scmp.ne.s32.totalorder %s140, %s156
      %p158 = scmp.eq.s32.totalorder %s18, 0
      %p159 = por %p157, %p158
      %p160 = scmp.le.s32.totalorder 1, %s12
      %p161 = scmp.lt.s32.totalorder %s12, 9
      %p162 = pnand %p160, %p161
      %p163 = pneg %p162
      // Predicated region
      $region9: #{embedding_forward.1} parent=5 // pred_check
        _
      $region10: #{embedding_forward.1} parent=5 // pred_check_branch
        %165 = sbr.rel (%p162) target = $region12
      $region11: #{embedding_forward.1} parent=5 // pred_region
        %s166 = ssub.s32 %s12, 1
        // Predicated region
        $region13: #{embedding_forward.1} parent=11 // pred_check
          %p167 = pneg %p94
        $region14: #{embedding_forward.1} parent=11 // pred_check_branch
          %169 = sbr.rel (%p167) target = $region16
        $region15: #{embedding_forward.1} parent=11 // pred_region
          %s170 = smul.u32 32, %s25
          %p171 = scmp.lt.s32.totalorder %s170, 31
          %s172 = scalar_select %p171, %s170, 31
          %s173 = smul.addr %s172, 8
          %s174 = scalar_lea.vmem %s1, %s173
          %s175 = smul.u32 32, %s25
        $region16: #{embedding_forward.1} parent=11 // pred_fallthru
          _
        // Predicated region
        $region17: #{embedding_forward.1} parent=11 // pred_check
          %p176 = pneg %p120
        $region18: #{embedding_forward.1} parent=11 // pred_check_branch
          %178 = sbr.rel (%p176) target = $region20
        $region19: #{embedding_forward.1} parent=11 // pred_region
          %s179 = smul.u32 32, %s25
          %p180 = scmp.lt.s32.totalorder %s179, 31
          %s181 = scalar_select %p180, %s179, 31
          %s182 = smul.addr %s181, 8
          %s183 = scalar_lea.vmem %s2, %s182
          %s184 = smul.u32 32, %s25
        $region20: #{embedding_forward.1} parent=11 // pred_fallthru
          _
      $region12: #{embedding_forward.1} parent=5 // pred_fallthru
        _
      %p185 = scmp.lt.s32.totalorder %s12, 8
      // Predicated region
      $region21: #{embedding_forward.1} parent=5 // pred_check
        %p186 = pneg %p185
      $region22: #{embedding_forward.1} parent=5 // pred_check_branch
        %188 = sbr.rel (%p186) target = $region24
      $region23: #{embedding_forward.1} parent=5 // pred_region
        // Predicated region
        $region25: #{embedding_forward.1} parent=23 // pred_check
          %p189 = pneg %p62
        $region26: #{embedding_forward.1} parent=23 // pred_check_branch
          %191 = sbr.rel (%p189) target = $region28
        $region27: #{embedding_forward.1} parent=23 // pred_region
          %p192 = scmp.lt.s32.totalorder %s19, 1
          %s193 = scalar_select %p192, %s19, 1
          %p194 = scmp.lt.s32.totalorder %s20, 3
          %s195 = scalar_select %p194, %s20, 3
          %p196 = scmp.lt.s32.totalorder %s22, 0
          %s197 = scalar_select %p196, %s22, 0
          %s198 = sadd.s32 %s197, %s195
          %s199 = smul.addr %s193, 4
          %s200 = sadd.s32 %s198, %s199
          %s201 = smul.addr %s200, 8
          %s202 = scalar_lea.vmem %s0, %s201
        $region28: #{embedding_forward.1} parent=23 // pred_fallthru
          _
      $region24: #{embedding_forward.1} parent=5 // pred_fallthru
        _
      %p203 = scmp.le.s32.totalorder 1, %s12
      %p204 = scmp.lt.s32.totalorder %s12, 9
      %p205 = pnand %p203, %p204
      %p206 = pneg %p205
      // Predicated region
      $region29: #{embedding_forward.1} parent=5 // pred_check
        _
      $region30: #{embedding_forward.1} parent=5 // pred_check_branch
        %208 = sbr.rel (%p205) target = $region32
      $region31: #{embedding_forward.1} parent=5 // pred_region
        %s209 = ssub.s32 %s12, 1
        %p210 = scmp.lt.s32.totalorder %s23, 1
        %s211 = scalar_select %p210, %s23, 1
        %p212 = scmp.lt.s32.totalorder %s24, 3
        %s213 = scalar_select %p212, %s24, 3
        %p214 = scmp.lt.s32.totalorder %s26, 0
        %s215 = scalar_select %p214, %s26, 0
        %s216 = sadd.s32 %s215, %s213
        %s217 = smul.addr %s211, 4
        %s218 = sadd.s32 %s216, %s217
        %s219 = smul.addr %s218, 8
        %s220 = scalar_lea.vmem %s0, %s219
        %p221 = pneg %p68
        %p222 = pneg %p65
        %s223 = smul.u32 32, %s25
        %p224 = scmp.lt.s32.totalorder %s223, 31
        %s225 = scalar_select %p224, %s223, 31
        %s226 = smul.addr %s225, 8
        %s227 = scalar_lea.vmem %s1, %s226
        %p228 = pneg %p94
        %p229 = pneg %p91
        %s230 = smul.u32 32, %s25
        %p231 = scmp.lt.s32.totalorder %s230, 31
        %s232 = scalar_select %p231, %s230, 31
        %s233 = smul.addr %s232, 8
        %s234 = scalar_lea.vmem %s2, %s233
        %p235 = pneg %p120
        %p236 = pneg %p117
        %p237 = pneg %p152
        %p238 = pneg %p149
        %s239 = sand.u32 %s139, 1
        %s240 = scalar_lea.sflag [#allocation3], %s239
        %s241 = sand.u32 %s139, 1
        %s242 = smul.addr %s241, 256
        %s243 = scalar_lea.vmem [#allocation2], %s242
        %p244 = scmp.lt.s32.totalorder %s23, 1
        %s245 = scalar_select %p244, %s23, 1
        %p246 = scmp.lt.s32.totalorder %s24, 3
        %s247 = scalar_select %p246, %s24, 3
        %p248 = scmp.lt.s32.totalorder %s26, 0
        %s249 = scalar_select %p248, %s26, 0
        %s250 = sadd.s32 %s249, %s247
        %s251 = smul.addr %s245, 4
        %s252 = sadd.s32 %s250, %s251
        %s253 = smul.addr %s252, 8
        %s254 = scalar_lea.vmem %s0, %s253
        %s255 = smul.u32 32, %s25
        %p256 = scmp.lt.s32.totalorder %s255, 31
        %s257 = scalar_select %p256, %s255, 31
        %s258 = smul.addr %s257, 8
        %s259 = scalar_lea.vmem %s1, %s258
        %s260 = smul.u32 32, %s25
        %s261 = smul.u32 32, %s25
        %p262 = scmp.lt.s32.totalorder %s261, 31
        %s263 = scalar_select %p262, %s261, 31
        %s264 = smul.addr %s263, 8
        %s265 = scalar_lea.vmem %s2, %s264
        %s266 = smul.u32 32, %s25
        %s267 = smul.u32 32, %s25
        %v268 = vld [vmem:[%s259] sm:$0xff]
        %v269 = vld [vmem:[%s259 + $0x8] sm:$0xff]
        %v270 = vld [vmem:[%s259 + $0x10] sm:$0xff]
        %v271 = vld [vmem:[%s259 + $0x18] sm:$0xff]
        %v272 = vld [vmem:[%s259 + $0x20] sm:$0xff]
        %v273 = vld [vmem:[%s259 + $0x28] sm:$0xff]
        %v274 = vld [vmem:[%s259 + $0x30] sm:$0xff]
        %v275 = vld [vmem:[%s259 + $0x38] sm:$0xff]
        %v276 = vld [vmem:[%s259 + $0x40] sm:$0xff]
        %v277 = vld [vmem:[%s259 + $0x48] sm:$0xff]
        %v278 = vld [vmem:[%s259 + $0x50] sm:$0xff]
        %v279 = vld [vmem:[%s259 + $0x58] sm:$0xff]
        %v280 = vld [vmem:[%s259 + $0x60] sm:$0xff]
        %v281 = vld [vmem:[%s259 + $0x68] sm:$0xff]
        %v282 = vld [vmem:[%s259 + $0x70] sm:$0xff]
        %v283 = vld [vmem:[%s259 + $0x78] sm:$0xff]
        %v284 = vld [vmem:[%s259 + $0x80] sm:$0xff]
        %v285 = vld [vmem:[%s259 + $0x88] sm:$0xff]
        %v286 = vld [vmem:[%s259 + $0x90] sm:$0xff]
        %v287 = vld [vmem:[%s259 + $0x98] sm:$0xff]
        %v288 = vld [vmem:[%s259 + $0xa0] sm:$0xff]
        %v289 = vld [vmem:[%s259 + $0xa8] sm:$0xff]
        %v290 = vld [vmem:[%s259 + $0xb0] sm:$0xff]
        %v291 = vld [vmem:[%s259 + $0xb8] sm:$0xff]
        %v292 = vld [vmem:[%s259 + $0xc0] sm:$0xff]
        %v293 = vld [vmem:[%s259 + $0xc8] sm:$0xff]
        %v294 = vld [vmem:[%s259 + $0xd0] sm:$0xff]
        %v295 = vld [vmem:[%s259 + $0xd8] sm:$0xff]
        %v296 = vld [vmem:[%s259 + $0xe0] sm:$0xff]
        %v297 = vld [vmem:[%s259 + $0xe8] sm:$0xff]
        %v298 = vld [vmem:[%s259 + $0xf0] sm:$0xff]
        %v299 = vld [vmem:[%s259 + $0xf8] sm:$0xff]
        %v300 = vld [vmem:[%s254] sm:$0xff]
        %v301 = vld [vmem:[%s265] sm:$0xff]
        %v302 = vld [vmem:[%s265 + $0x8] sm:$0xff]
        %v303 = vld [vmem:[%s265 + $0x10] sm:$0xff]
        %v304 = vld [vmem:[%s265 + $0x18] sm:$0xff]
        %v305 = vld [vmem:[%s265 + $0x20] sm:$0xff]
        %v306 = vld [vmem:[%s265 + $0x28] sm:$0xff]
        %v307 = vld [vmem:[%s265 + $0x30] sm:$0xff]
        %v308 = vld [vmem:[%s265 + $0x38] sm:$0xff]
        %v309 = vld [vmem:[%s265 + $0x40] sm:$0xff]
        %v310 = vld [vmem:[%s265 + $0x48] sm:$0xff]
        %v311 = vld [vmem:[%s265 + $0x50] sm:$0xff]
        %v312 = vld [vmem:[%s265 + $0x58] sm:$0xff]
        %v313 = vld [vmem:[%s265 + $0x60] sm:$0xff]
        %v314 = vld [vmem:[%s265 + $0x68] sm:$0xff]
        %v315 = vld [vmem:[%s265 + $0x70] sm:$0xff]
        %v316 = vld [vmem:[%s265 + $0x78] sm:$0xff]
        %v317 = vld [vmem:[%s265 + $0x80] sm:$0xff]
        %v318 = vld [vmem:[%s265 + $0x88] sm:$0xff]
        %v319 = vld [vmem:[%s265 + $0x90] sm:$0xff]
        %v320 = vld [vmem:[%s265 + $0x98] sm:$0xff]
        %v321 = vld [vmem:[%s265 + $0xa0] sm:$0xff]
        %v322 = vld [vmem:[%s265 + $0xa8] sm:$0xff]
        %v323 = vld [vmem:[%s265 + $0xb0] sm:$0xff]
        %v324 = vld [vmem:[%s265 + $0xb8] sm:$0xff]
        %v325 = vld [vmem:[%s265 + $0xc0] sm:$0xff]
        %v326 = vld [vmem:[%s265 + $0xc8] sm:$0xff]
        %v327 = vld [vmem:[%s265 + $0xd0] sm:$0xff]
        %v328 = vld [vmem:[%s265 + $0xd8] sm:$0xff]
        %v329 = vld [vmem:[%s265 + $0xe0] sm:$0xff]
        %v330 = vld [vmem:[%s265 + $0xe8] sm:$0xff]
        %v331 = vld [vmem:[%s265 + $0xf0] sm:$0xff]
        %v332 = vld [vmem:[%s265 + $0xf8] sm:$0xff]
        %334 = vset.pattern.permute.xlu0 0
        %335 = vperm.xlu0 %334, %v301
        %v336 = vpop.permute.xlu0 %335
        %339 = vset.pattern.permute.xlu0 0
        %340 = vperm.xlu0 %339, %v302
        %v341 = vpop.permute.xlu0 %340
        %344 = vset.pattern.permute.xlu0 0
        %345 = vperm.xlu0 %344, %v303
        %v346 = vpop.permute.xlu0 %345
        %349 = vset.pattern.permute.xlu0 0
        %350 = vperm.xlu0 %349, %v304
        %v351 = vpop.permute.xlu0 %350
        %354 = vset.pattern.permute.xlu0 0
        %355 = vperm.xlu0 %354, %v305
        %v356 = vpop.permute.xlu0 %355
        %359 = vset.pattern.permute.xlu0 0
        %360 = vperm.xlu0 %359, %v306
        %v361 = vpop.permute.xlu0 %360
        %364 = vset.pattern.permute.xlu0 0
        %365 = vperm.xlu0 %364, %v307
        %v366 = vpop.permute.xlu0 %365
        %369 = vset.pattern.permute.xlu0 0
        %370 = vperm.xlu0 %369, %v308
        %v371 = vpop.permute.xlu0 %370
        %374 = vset.pattern.permute.xlu0 0
        %375 = vperm.xlu0 %374, %v309
        %v376 = vpop.permute.xlu0 %375
        %379 = vset.pattern.permute.xlu0 0
        %380 = vperm.xlu0 %379, %v310
        %v381 = vpop.permute.xlu0 %380
        %384 = vset.pattern.permute.xlu0 0
        %385 = vperm.xlu0 %384, %v311
        %v386 = vpop.permute.xlu0 %385
        %389 = vset.pattern.permute.xlu0 0
        %390 = vperm.xlu0 %389, %v312
        %v391 = vpop.permute.xlu0 %390
        %394 = vset.pattern.permute.xlu0 0
        %395 = vperm.xlu0 %394, %v313
        %v396 = vpop.permute.xlu0 %395
        %399 = vset.pattern.permute.xlu0 0
        %400 = vperm.xlu0 %399, %v314
        %v401 = vpop.permute.xlu0 %400
        %404 = vset.pattern.permute.xlu0 0
        %405 = vperm.xlu0 %404, %v315
        %v406 = vpop.permute.xlu0 %405
        %409 = vset.pattern.permute.xlu0 0
        %410 = vperm.xlu0 %409, %v316
        %v411 = vpop.permute.xlu0 %410
        %414 = vset.pattern.permute.xlu0 0
        %415 = vperm.xlu0 %414, %v317
        %v416 = vpop.permute.xlu0 %415
        %419 = vset.pattern.permute.xlu0 0
        %420 = vperm.xlu0 %419, %v318
        %v421 = vpop.permute.xlu0 %420
        %424 = vset.pattern.permute.xlu0 0
        %425 = vperm.xlu0 %424, %v319
        %v426 = vpop.permute.xlu0 %425
        %429 = vset.pattern.permute.xlu0 0
        %430 = vperm.xlu0 %429, %v320
        %v431 = vpop.permute.xlu0 %430
        %434 = vset.pattern.permute.xlu0 0
        %435 = vperm.xlu0 %434, %v321
        %v436 = vpop.permute.xlu0 %435
        %439 = vset.pattern.permute.xlu0 0
        %440 = vperm.xlu0 %439, %v322
        %v441 = vpop.permute.xlu0 %440
        %444 = vset.pattern.permute.xlu0 0
        %445 = vperm.xlu0 %444, %v323
        %v446 = vpop.permute.xlu0 %445
        %449 = vset.pattern.permute.xlu0 0
        %450 = vperm.xlu0 %449, %v324
        %v451 = vpop.permute.xlu0 %450
        %454 = vset.pattern.permute.xlu0 0
        %455 = vperm.xlu0 %454, %v325
        %v456 = vpop.permute.xlu0 %455
        %459 = vset.pattern.permute.xlu0 0
        %460 = vperm.xlu0 %459, %v326
        %v461 = vpop.permute.xlu0 %460
        %464 = vset.pattern.permute.xlu0 0
        %465 = vperm.xlu0 %464, %v327
        %v466 = vpop.permute.xlu0 %465
        %469 = vset.pattern.permute.xlu0 0
        %470 = vperm.xlu0 %469, %v328
        %v471 = vpop.permute.xlu0 %470
        %474 = vset.pattern.permute.xlu0 0
        %475 = vperm.xlu0 %474, %v329
        %v476 = vpop.permute.xlu0 %475
        %479 = vset.pattern.permute.xlu0 0
        %480 = vperm.xlu0 %479, %v330
        %v481 = vpop.permute.xlu0 %480
        %484 = vset.pattern.permute.xlu0 0
        %485 = vperm.xlu0 %484, %v331
        %v486 = vpop.permute.xlu0 %485
        %489 = vset.pattern.permute.xlu0 0
        %490 = vperm.xlu0 %489, %v332
        %v491 = vpop.permute.xlu0 %490
        %vm493 = vcmask 64512
        %v495 = vsel %vm493, %v268, 0
        %v498 = vsel %vm493, %v269, 0
        %v501 = vsel %vm493, %v270, 0
        %v504 = vsel %vm493, %v271, 0
        %v507 = vsel %vm493, %v272, 0
        %v510 = vsel %vm493, %v273, 0
        %v513 = vsel %vm493, %v274, 0
        %v516 = vsel %vm493, %v275, 0
        %v519 = vsel %vm493, %v276, 0
        %v522 = vsel %vm493, %v277, 0
        %v525 = vsel %vm493, %v278, 0
        %v528 = vsel %vm493, %v279, 0
        %v531 = vsel %vm493, %v280, 0
        %v534 = vsel %vm493, %v281, 0
        %v537 = vsel %vm493, %v282, 0
        %v540 = vsel %vm493, %v283, 0
        %v543 = vsel %vm493, %v284, 0
        %v546 = vsel %vm493, %v285, 0
        %v549 = vsel %vm493, %v286, 0
        %v552 = vsel %vm493, %v287, 0
        %v555 = vsel %vm493, %v288, 0
        %v558 = vsel %vm493, %v289, 0
        %v561 = vsel %vm493, %v290, 0
        %v564 = vsel %vm493, %v291, 0
        %v567 = vsel %vm493, %v292, 0
        %v570 = vsel %vm493, %v293, 0
        %v573 = vsel %vm493, %v294, 0
        %v576 = vsel %vm493, %v295, 0
        %v579 = vsel %vm493, %v296, 0
        %v582 = vsel %vm493, %v297, 0
        %v585 = vsel %vm493, %v298, 0
        %v588 = vsel %vm493, %v299, 0
        %590 = vmatprep.subr.mxu0 0.0
        %591 = vmatpush1.msra.mxu0 0.0
        %592 = vmatprep.subr.mxu0 0.0
        %593 = vmatpush1.msra.mxu0 0.0
        %594 = vmatprep.subr.mxu0 0.0
        %595 = vmatpush1.msra.mxu0 0.0
        %596 = vmatprep.subr.mxu0 0.0
        %597 = vmatpush1.msra.mxu0 0.0
        %598 = vmatprep.subr.mxu0 0.0
        %599 = vmatpush1.msra.mxu0 0.0
        %600 = vmatprep.subr.mxu0 0.0
        %601 = vmatpush1.msra.mxu0 0.0
        %602 = vmatprep.subr.mxu0 0.0
        %603 = vmatpush1.msra.mxu0 0.0
        %604 = vmatprep.subr.mxu0 0.0
        %605 = vmatpush1.msra.mxu0 0.0
        %606 = vmatprep.subr.mxu0 0.0
        %607 = vmatpush1.msra.mxu0 0.0
        %608 = vmatprep.subr.mxu0 0.0
        %609 = vmatpush1.msra.mxu0 0.0
        %610 = vmatprep.subr.mxu0 0.0
        %611 = vmatpush1.msra.mxu0 0.0
        %612 = vmatprep.subr.mxu0 0.0
        %613 = vmatpush1.msra.mxu0 0.0
        %614 = vmatprep.subr.mxu0 0.0
        %615 = vmatpush1.msra.mxu0 0.0
        %616 = vmatprep.subr.mxu0 0.0
        %617 = vmatpush1.msra.mxu0 0.0
        %618 = vmatprep.subr.mxu0 0.0
        %619 = vmatpush1.msra.mxu0 0.0
        %620 = vmatprep.subr.mxu0 0.0
        %621 = vmatpush1.msra.mxu0 %v300
        %622 = vmatprep.subr.mxu0 0.0
        %623 = vmatpush2.msra.mxu0 0.0
        %624 = vmatprep.subr.mxu0 0.0
        %625 = vmatpush2.msra.mxu0 0.0
        %626 = vmatprep.subr.mxu0 0.0
        %627 = vmatpush2.msra.mxu0 0.0
        %628 = vmatprep.subr.mxu0 0.0
        %629 = vmatpush2.msra.mxu0 0.0
        %630 = vmatprep.subr.mxu0 0.0
        %631 = vmatpush2.msra.mxu0 0.0
        %632 = vmatprep.subr.mxu0 0.0
        %633 = vmatpush2.msra.mxu0 0.0
        %634 = vmatprep.subr.mxu0 0.0
        %635 = vmatpush2.msra.mxu0 0.0
        %636 = vmatprep.subr.mxu0 0.0
        %637 = vmatpush2.msra.mxu0 0.0
        %638 = vmatprep.subr.mxu0 0.0
        %639 = vmatpush2.msra.mxu0 0.0
        %640 = vmatprep.subr.mxu0 0.0
        %641 = vmatpush2.msra.mxu0 0.0
        %642 = vmatprep.subr.mxu0 0.0
        %643 = vmatpush2.msra.mxu0 0.0
        %644 = vmatprep.subr.mxu0 0.0
        %645 = vmatpush2.msra.mxu0 0.0
        %646 = vmatprep.subr.mxu0 0.0
        %647 = vmatpush2.msra.mxu0 0.0
        %648 = vmatprep.subr.mxu0 0.0
        %649 = vmatpush2.msra.mxu0 0.0
        %650 = vmatprep.subr.mxu0 0.0
        %651 = vmatpush2.msra.mxu0 0.0
        %652 = vmatprep.subr.mxu0 0.0
        %653 = vmatpush2.msra.mxu0 0.0
        %654 = vmatprep.mubr.f32.mxu0 0.0
        %655 = vmatmul.mubr.f32.gmra.mxu0 %v495
        %v656 = vpop.f32.mrf.mxu0
        %v657 = vadd.f32 %v336, %v656
        %v658 = vpop.f32.mrf.mxu0
        %659 = vmatprep.mubr.f32.mxu0 0.0
        %660 = vmatmul.mubr.f32.gmra.mxu0 %v498
        %v661 = vpop.f32.mrf.mxu0
        %v662 = vadd.f32 %v341, %v661
        %v663 = vpop.f32.mrf.mxu0
        %664 = vmatprep.mubr.f32.mxu0 0.0
        %665 = vmatmul.mubr.f32.gmra.mxu0 %v501
        %v666 = vpop.f32.mrf.mxu0
        %v667 = vadd.f32 %v346, %v666
        %v668 = vpop.f32.mrf.mxu0
        %669 = vmatprep.mubr.f32.mxu0 0.0
        %670 = vmatmul.mubr.f32.gmra.mxu0 %v504
        %v671 = vpop.f32.mrf.mxu0
        %v672 = vadd.f32 %v351, %v671
        %v673 = vpop.f32.mrf.mxu0
        %674 = vmatprep.mubr.f32.mxu0 0.0
        %675 = vmatmul.mubr.f32.gmra.mxu0 %v507
        %v676 = vpop.f32.mrf.mxu0
        %v677 = vadd.f32 %v356, %v676
        %v678 = vpop.f32.mrf.mxu0
        %679 = vmatprep.mubr.f32.mxu0 0.0
        %680 = vmatmul.mubr.f32.gmra.mxu0 %v510
        %v681 = vpop.f32.mrf.mxu0
        %v682 = vadd.f32 %v361, %v681
        %v683 = vpop.f32.mrf.mxu0
        %684 = vmatprep.mubr.f32.mxu0 0.0
        %685 = vmatmul.mubr.f32.gmra.mxu0 %v513
        %v686 = vpop.f32.mrf.mxu0
        %v687 = vadd.f32 %v366, %v686
        %v688 = vpop.f32.mrf.mxu0
        %689 = vmatprep.mubr.f32.mxu0 0.0
        %690 = vmatmul.mubr.f32.gmra.mxu0 %v516
        %v691 = vpop.f32.mrf.mxu0
        %v692 = vadd.f32 %v371, %v691
        %v693 = vpop.f32.mrf.mxu0
        %694 = vmatprep.mubr.f32.mxu0 0.0
        %695 = vmatmul.mubr.f32.gmra.mxu0 %v519
        %v696 = vpop.f32.mrf.mxu0
        %v697 = vadd.f32 %v376, %v696
        %v698 = vpop.f32.mrf.mxu0
        %699 = vmatprep.mubr.f32.mxu0 0.0
        %700 = vmatmul.mubr.f32.gmra.mxu0 %v522
        %v701 = vpop.f32.mrf.mxu0
        %v702 = vadd.f32 %v381, %v701
        %v703 = vpop.f32.mrf.mxu0
        %704 = vmatprep.mubr.f32.mxu0 0.0
        %705 = vmatmul.mubr.f32.gmra.mxu0 %v525
        %v706 = vpop.f32.mrf.mxu0
        %v707 = vadd.f32 %v386, %v706
        %v708 = vpop.f32.mrf.mxu0
        %709 = vmatprep.mubr.f32.mxu0 0.0
        %710 = vmatmul.mubr.f32.gmra.mxu0 %v528
        %v711 = vpop.f32.mrf.mxu0
        %v712 = vadd.f32 %v391, %v711
        %v713 = vpop.f32.mrf.mxu0
        %714 = vmatprep.mubr.f32.mxu0 0.0
        %715 = vmatmul.mubr.f32.gmra.mxu0 %v531
        %v716 = vpop.f32.mrf.mxu0
        %v717 = vadd.f32 %v396, %v716
        %v718 = vpop.f32.mrf.mxu0
        %719 = vmatprep.mubr.f32.mxu0 0.0
        %720 = vmatmul.mubr.f32.gmra.mxu0 %v534
        %v721 = vpop.f32.mrf.mxu0
        %v722 = vadd.f32 %v401, %v721
        %v723 = vpop.f32.mrf.mxu0
        %724 = vmatprep.mubr.f32.mxu0 0.0
        %725 = vmatmul.mubr.f32.gmra.mxu0 %v537
        %v726 = vpop.f32.mrf.mxu0
        %v727 = vadd.f32 %v406, %v726
        %v728 = vpop.f32.mrf.mxu0
        %729 = vmatprep.mubr.f32.mxu0 0.0
        %730 = vmatmul.mubr.f32.gmra.mxu0 %v540
        %v731 = vpop.f32.mrf.mxu0
        %v732 = vadd.f32 %v411, %v731
        %v733 = vpop.f32.mrf.mxu0
        %734 = vmatprep.mubr.f32.mxu0 0.0
        %735 = vmatmul.mubr.f32.gmra.mxu0 %v543
        %v736 = vpop.f32.mrf.mxu0
        %v737 = vadd.f32 %v416, %v736
        %v738 = vpop.f32.mrf.mxu0
        %739 = vmatprep.mubr.f32.mxu0 0.0
        %740 = vmatmul.mubr.f32.gmra.mxu0 %v546
        %v741 = vpop.f32.mrf.mxu0
        %v742 = vadd.f32 %v421, %v741
        %v743 = vpop.f32.mrf.mxu0
        %744 = vmatprep.mubr.f32.mxu0 0.0
        %745 = vmatmul.mubr.f32.gmra.mxu0 %v549
        %v746 = vpop.f32.mrf.mxu0
        %v747 = vadd.f32 %v426, %v746
        %v748 = vpop.f32.mrf.mxu0
        %749 = vmatprep.mubr.f32.mxu0 0.0
        %750 = vmatmul.mubr.f32.gmra.mxu0 %v552
        %v751 = vpop.f32.mrf.mxu0
        %v752 = vadd.f32 %v431, %v751
        %v753 = vpop.f32.mrf.mxu0
        %754 = vmatprep.mubr.f32.mxu0 0.0
        %755 = vmatmul.mubr.f32.gmra.mxu0 %v555
        %v756 = vpop.f32.mrf.mxu0
        %v757 = vadd.f32 %v436, %v756
        %v758 = vpop.f32.mrf.mxu0
        %759 = vmatprep.mubr.f32.mxu0 0.0
        %760 = vmatmul.mubr.f32.gmra.mxu0 %v558
        %v761 = vpop.f32.mrf.mxu0
        %v762 = vadd.f32 %v441, %v761
        %v763 = vpop.f32.mrf.mxu0
        %764 = vmatprep.mubr.f32.mxu0 0.0
        %765 = vmatmul.mubr.f32.gmra.mxu0 %v561
        %v766 = vpop.f32.mrf.mxu0
        %v767 = vadd.f32 %v446, %v766
        %v768 = vpop.f32.mrf.mxu0
        %769 = vmatprep.mubr.f32.mxu0 0.0
        %770 = vmatmul.mubr.f32.gmra.mxu0 %v564
        %v771 = vpop.f32.mrf.mxu0
        %v772 = vadd.f32 %v451, %v771
        %v773 = vpop.f32.mrf.mxu0
        %774 = vmatprep.mubr.f32.mxu0 0.0
        %775 = vmatmul.mubr.f32.gmra.mxu0 %v567
        %v776 = vpop.f32.mrf.mxu0
        %v777 = vadd.f32 %v456, %v776
        %v778 = vpop.f32.mrf.mxu0
        %779 = vmatprep.mubr.f32.mxu0 0.0
        %780 = vmatmul.mubr.f32.gmra.mxu0 %v570
        %v781 = vpop.f32.mrf.mxu0
        %v782 = vadd.f32 %v461, %v781
        %v783 = vpop.f32.mrf.mxu0
        %784 = vmatprep.mubr.f32.mxu0 0.0
        %785 = vmatmul.mubr.f32.gmra.mxu0 %v573
        %v786 = vpop.f32.mrf.mxu0
        %v787 = vadd.f32 %v466, %v786
        %v788 = vpop.f32.mrf.mxu0
        %789 = vmatprep.mubr.f32.mxu0 0.0
        %790 = vmatmul.mubr.f32.gmra.mxu0 %v576
        %v791 = vpop.f32.mrf.mxu0
        %v792 = vadd.f32 %v471, %v791
        %v793 = vpop.f32.mrf.mxu0
        %794 = vmatprep.mubr.f32.mxu0 0.0
        %795 = vmatmul.mubr.f32.gmra.mxu0 %v579
        %v796 = vpop.f32.mrf.mxu0
        %v797 = vadd.f32 %v476, %v796
        %v798 = vpop.f32.mrf.mxu0
        %799 = vmatprep.mubr.f32.mxu0 0.0
        %800 = vmatmul.mubr.f32.gmra.mxu0 %v582
        %v801 = vpop.f32.mrf.mxu0
        %v802 = vadd.f32 %v481, %v801
        %v803 = vpop.f32.mrf.mxu0
        %804 = vmatprep.mubr.f32.mxu0 0.0
        %805 = vmatmul.mubr.f32.gmra.mxu0 %v585
        %v806 = vpop.f32.mrf.mxu0
        %v807 = vadd.f32 %v486, %v806
        %v808 = vpop.f32.mrf.mxu0
        %809 = vmatprep.mubr.f32.mxu0 0.0
        %810 = vmatmul.mubr.f32.gmra.mxu0 %v588
        %v811 = vpop.f32.mrf.mxu0
        %v812 = vadd.f32 %v491, %v811
        %v813 = vpop.f32.mrf.mxu0
        %814 = vdwg.mxu0
        %815 = vst [vmem:[%s243] sm:$0xff] %v657
        %816 = vst [vmem:[%s243 + $0x8] sm:$0xff] %v662
        %817 = vst [vmem:[%s243 + $0x10] sm:$0xff] %v667
        %818 = vst [vmem:[%s243 + $0x18] sm:$0xff] %v672
        %819 = vst [vmem:[%s243 + $0x20] sm:$0xff] %v677
        %820 = vst [vmem:[%s243 + $0x28] sm:$0xff] %v682
        %821 = vst [vmem:[%s243 + $0x30] sm:$0xff] %v687
        %822 = vst [vmem:[%s243 + $0x38] sm:$0xff] %v692
        %823 = vst [vmem:[%s243 + $0x40] sm:$0xff] %v697
        %824 = vst [vmem:[%s243 + $0x48] sm:$0xff] %v702
        %825 = vst [vmem:[%s243 + $0x50] sm:$0xff] %v707
        %826 = vst [vmem:[%s243 + $0x58] sm:$0xff] %v712
        %827 = vst [vmem:[%s243 + $0x60] sm:$0xff] %v717
        %828 = vst [vmem:[%s243 + $0x68] sm:$0xff] %v722
        %829 = vst [vmem:[%s243 + $0x70] sm:$0xff] %v727
        %830 = vst [vmem:[%s243 + $0x78] sm:$0xff] %v732
        %831 = vst [vmem:[%s243 + $0x80] sm:$0xff] %v737
        %832 = vst [vmem:[%s243 + $0x88] sm:$0xff] %v742
        %833 = vst [vmem:[%s243 + $0x90] sm:$0xff] %v747
        %834 = vst [vmem:[%s243 + $0x98] sm:$0xff] %v752
        %835 = vst [vmem:[%s243 + $0xa0] sm:$0xff] %v757
        %836 = vst [vmem:[%s243 + $0xa8] sm:$0xff] %v762
        %837 = vst [vmem:[%s243 + $0xb0] sm:$0xff] %v767
        %838 = vst [vmem:[%s243 + $0xb8] sm:$0xff] %v772
        %839 = vst [vmem:[%s243 + $0xc0] sm:$0xff] %v777
        %840 = vst [vmem:[%s243 + $0xc8] sm:$0xff] %v782
        %841 = vst [vmem:[%s243 + $0xd0] sm:$0xff] %v787
        %842 = vst [vmem:[%s243 + $0xd8] sm:$0xff] %v792
        %843 = vst [vmem:[%s243 + $0xe0] sm:$0xff] %v797
        %844 = vst [vmem:[%s243 + $0xe8] sm:$0xff] %v802
        %845 = vst [vmem:[%s243 + $0xf0] sm:$0xff] %v807
        %846 = vst [vmem:[%s243 + $0xf8] sm:$0xff] %v812
        %s847 = sand.u32 %s139, 1
        %s848 = scalar_lea.sflag [#allocation3], %s847
        %s849 = sand.u32 %s139, 1
        %s850 = smul.addr %s849, 256
        %s851 = scalar_lea.vmem [#allocation2], %s850
        // Predicated region
        $region33: #{embedding_forward.1} parent=31 // pred_check
          %p852 = pneg %p149
        $region34: #{embedding_forward.1} parent=31 // pred_check_branch
          %854 = sbr.rel (%p852) target = $region36
        $region35: #{embedding_forward.1} parent=31 // pred_region
          %s855 = smul.u32 32, %s25
          %s857 = ssub.s32 4096, 4096
          %858 = vsyncadd %s848, %s857
          %s859 = sadd.s32 %s26, %s855
          %s860 = smul.addr %s24, 32
          %s861 = sadd.s32 %s859, %s860
          %s862 = smul.addr %s23, 128
          %s863 = sadd.s32 %s861, %s862
          %s864 = smul.addr %s863, 128
          %s865 = scalar_lea.hbm %s3, %s864
          %s866 = sshll.u32 %s851, 4
          %s867 = int_to_ptr.vmem [resolvable:$true] %s866
          %872 = dma.vmem_to_hbm [thread:$0]  %s867, 4096, %s865, %s848, 128, 128, 8
        $region36: #{embedding_forward.1} parent=31 // pred_fallthru
          _
      $region32: #{embedding_forward.1} parent=5 // pred_fallthru
        _
      %p873 = scmp.le.s32.totalorder 2, %s12
      // Predicated region
      $region37: #{embedding_forward.1} parent=5 // pred_check
        %p874 = pneg %p873
      $region38: #{embedding_forward.1} parent=5 // pred_check_branch
        %876 = sbr.rel (%p874) target = $region40
      $region39: #{embedding_forward.1} parent=5 // pred_region
        %s877 = ssub.s32 %s12, 2
        // Predicated region
        $region41: #{embedding_forward.1} parent=39 // pred_check
          %p878 = pneg %p155
        $region42: #{embedding_forward.1} parent=39 // pred_check_branch
          %880 = sbr.rel (%p878) target = $region44
        $region43: #{embedding_forward.1} parent=39 // pred_region
          %s881 = sand.u32 %s140, 1
          %s882 = scalar_lea.sflag [#allocation3], %s881
          %s883 = sand.u32 %s140, 1
          %s884 = smul.addr %s883, 256
          %s885 = scalar_lea.vmem [#allocation2], %s884
          %886 = dma.done %s882, 4096
        $region44: #{embedding_forward.1} parent=39 // pred_fallthru
          _
      $region40: #{embedding_forward.1} parent=5 // pred_fallthru
        _
    $region6: #{embedding_forward.1} parent=1 // loop_footer
      %s16 = sadd.s32 1, %s12
    $region7: #{embedding_forward.1} parent=1 // loop_footer_branch
      %11 = sbr.rel target = $region3
    $region8: #{embedding_forward.1} parent=1 // loop_exit
      _
    %887 = vsyncpa [#allocation3], 1
    %s888 = scalar_lea.sflag [#allocation3], 1
    %889 = vsyncpa %s888, 1

</llo_original>
